<compile_context>
chip_gen: v6e
topology: v6e:2x2x1
jax: 0.10.0
libtpu: 0.0.40
codegen_flags: <defaults>
</compile_context>

<pallas_src>
import functools
import math

import jax
import jax.numpy as jnp
from jax.experimental import pallas as pl
from jax.experimental.pallas import tpu as pltpu


def _gating_kernel(x_ref, mu_ref, o_ref, *, compute_dtype):
    # x_ref: (tb, td), mu_ref: (1, td).  Compute in the promoted dtype (so f32
    # mu is not degraded for bf16 activations), round at the store only.
    o_ref[...] = (
        x_ref[...].astype(compute_dtype) * mu_ref[...].astype(compute_dtype)
    ).astype(o_ref.dtype)


def _sublane_multiple(dtype) -> int:
    """Packed sublane alignment: 8 for 4-byte, 16 for 2-byte, 32 for 1-byte."""
    itemsize = jnp.dtype(dtype).itemsize
    return max(8, 32 // max(1, itemsize))


def _round_down(v: int, m: int) -> int:
    return (v // m) * m


def _round_up(v: int, m: int) -> int:
    return ((v + m - 1) // m) * m


def _chip_profile():
    """Per-generation budgets: (#TensorCores, working-set budget, vmem limit cap)."""
    kind = ""
    try:
        kind = jax.devices()[0].device_kind.lower()
    except Exception:  # pragma: no cover
        pass
    physical = None
    try:
        physical = int(pltpu.get_tpu_info().vmem_capacity_bytes)
    except Exception:  # pragma: no cover - query unavailable (interpret, etc.)
        pass

    if "v7" in kind:
        # 2 TCs/chip, only 64 MiB physical VMEM per TC -> tighter budget.
        prof = {"num_tc": 2, "ws_budget": 16 << 20, "limit_cap": 24 << 20,
                "physical": physical or (64 << 20)}
    elif "v6" in kind:
        prof = {"num_tc": 1, "ws_budget": 24 << 20, "limit_cap": 32 << 20,
                "physical": physical or (128 << 20)}
    elif "v5" in kind:
        # Raise scoped VMEM above the 16 MiB default explicitly (physical 128 MiB).
        prof = {"num_tc": 1, "ws_budget": 24 << 20, "limit_cap": 32 << 20,
                "physical": physical or (128 << 20)}
    else:  # unknown chip: conservative
        prof = {"num_tc": 1, "ws_budget": 16 << 20, "limit_cap": 24 << 20,
                "physical": physical or (64 << 20)}

    prof["ws_budget"] = min(prof["ws_budget"], prof["physical"] // 4)
    prof["limit_cap"] = min(prof["limit_cap"], prof["physical"] // 2)
    return prof


def _pick_tiles(B: int, D: int, x_dtype, out_dtype, profile):
    """Choose (block_b, block_d): dtype-aligned, lane-dense, budget-sized."""
    sub = max(_sublane_multiple(x_dtype), _sublane_multiple(out_dtype))
    bytes_per_elem = (jnp.dtype(x_dtype).itemsize + jnp.dtype(out_dtype).itemsize)

    # Lane axis: full row when it fits, else a lane-dense multiple of 128.
    max_block_d = 2048
    block_d = D if D <= max_block_d else _round_down(max_block_d, 128)

    # Sublane axis: double-buffered (x tile + out tile) must fit the budget.
    per_row_bytes = max(1, 2 * block_d * bytes_per_elem)
    block_b = _round_down(max(1, profile["ws_budget"] // per_row_bytes), sub)
    block_b = max(block_b, sub)
    if block_b >= B:
        block_b = B  # full-extent block is always legal

    # v7x only: make sure both TensorCores get a block when B allows it.
    gb = pl.cdiv(B, block_b)
    gd = pl.cdiv(D, block_d)
    if profile["num_tc"] >= 2 and gb * gd < 2 and B >= 2 * sub:
        block_b = min(_round_up(pl.cdiv(B, 2), sub), B)

    return block_b, block_d, sub


def gating_forward(x, mu, *, out_dtype=None, block_b=None, block_d=None,
                   donate_x=False):
    """Pallas forward of GatingLayer: out = x * mu (mu broadcast over batch)."""
    D = mu.shape[-1]
    assert mu.shape == (D,), f"mu must have shape ({D},), got {mu.shape}"
    assert x.shape[-1] == D, f"x last dim {x.shape[-1]} != input_dim {D}"
    orig_shape = x.shape

    compute_dtype = jnp.promote_types(x.dtype, mu.dtype)
    if out_dtype is None:
        out_dtype = compute_dtype  # default: strict torch promotion
    out_dtype = jnp.dtype(out_dtype)

    x2 = x.reshape(-1, D)
    B = x2.shape[0]

    # ---- narrow-D folding: make the output last dim lane-dense (>=128) ----
    mu_eff, B_eff, D_eff, fold = mu, B, D, 1
    if block_d is None and D % 128 != 0:
        k0 = 128 // math.gcd(D, 128)
        if k0 <= B and B % k0 == 0:
            fold = k0
            while fold * 2 <= B and B % (fold * 2) == 0 and fold * D < 512:
                fold *= 2
            B_eff, D_eff = B // fold, fold * D
            x2 = x2.reshape(B_eff, D_eff)
            mu_eff = jnp.tile(mu, fold)
    # TODO(synk): if B % k0 != 0 we fall back to a full-extent (masked-store)
    # block; padding B would fix it but changes the output buffer size.

    profile = _chip_profile()
    auto_b, auto_d, sub = _pick_tiles(B_eff, D_eff, x2.dtype, out_dtype, profile)
    if block_b is None:
        block_b = auto_b
    if block_d is None:
        block_d = auto_d

    # Validate the (packed-sublane, 128) block constraint up front.
    if block_b != B_eff and block_b % sub != 0:
        raise ValueError(
            f"block_b={block_b} must equal B={B_eff} or be a multiple of {sub}")
    if block_d != D_eff and block_d % 128 != 0:
        raise ValueError(
            f"block_d={block_d} must equal D={D_eff} or be a multiple of 128")

    mu2d = mu_eff.reshape(1, D_eff)  # keep mu in its own (f32) dtype
    # D-blocks outer, B-blocks inner: mu tile is constant across the inner loop.
    grid = (pl.cdiv(D_eff, block_d), pl.cdiv(B_eff, block_b))

    itemsize_x = jnp.dtype(x2.dtype).itemsize
    itemsize_o = out_dtype.itemsize
    cost = pl.CostEstimate(
        flops=B * D,
        transcendentals=0,
        bytes_accessed=B * D * (itemsize_x + itemsize_o)
        + D_eff * jnp.dtype(mu.dtype).itemsize,
    )

    # Double-buffered x + out tiles plus the resident mu row, with headroom.
    ws_bytes = (2 * block_b * block_d * (itemsize_x + itemsize_o)
                + 2 * block_d * jnp.dtype(mu.dtype).itemsize)
    vmem_limit = int(min(profile["limit_cap"],
                         max(16 << 20, ws_bytes + (4 << 20))))

    io_alias = {}
    if donate_x and out_dtype == jnp.dtype(x2.dtype):
        io_alias = {0: 0}  # reuse x's HBM buffer for the output

    out = pl.pallas_call(
        functools.partial(_gating_kernel, compute_dtype=compute_dtype),
        out_shape=jax.ShapeDtypeStruct((B_eff, D_eff), out_dtype),
        grid_spec=pltpu.PrefetchScalarGridSpec(
            num_scalar_prefetch=0,
            grid=grid,
            in_specs=[
                pl.BlockSpec((block_b, block_d), lambda j, i: (i, j)),  # x tile
                pl.BlockSpec((1, block_d), lambda j, i: (0, j)),        # mu row
            ],
            out_specs=pl.BlockSpec((block_b, block_d), lambda j, i: (i, j)),
        ),
        compiler_params=pltpu.CompilerParams(
            dimension_semantics=("parallel", "parallel"),
            vmem_limit_bytes=vmem_limit,
        ),
        cost_estimate=cost,
        input_output_aliases=io_alias,
    )(x2, mu2d)

    return out.reshape(orig_shape)


def gating_regularizer(mu):
    # regularizer(x) = sum(|x|); trivial reduction, plain JAX glue is fine.
    return jnp.sum(jnp.abs(mu))


if __name__ == "__main__":
    key = jax.random.PRNGKey(0)
    k_mu, k_x, k_x2, k_x3, k_mu2, k_x4, k_mu3 = jax.random.split(key, 7)

    # --- small case matching the module defaults (f32) -------------------
    batch, input_dim = 8, 128
    mu = 0.01 * jax.random.normal(k_mu, (input_dim,), dtype=jnp.float32)
    x = jax.random.normal(k_x, (batch, input_dim), dtype=jnp.float32)

    out = jax.block_until_ready(gating_forward(x, mu))
    ref = x * mu[None, :]
    assert out.shape == (batch, input_dim)
    assert out.dtype == jnp.float32
    assert jnp.allclose(out, ref, atol=1e-6, rtol=1e-6)

    # --- narrow / non-lane-dense D: exercises the row-folding path -------
    B2, D2 = 64, 96
    mu_n = 0.01 * jax.random.normal(k_mu2, (D2,), dtype=jnp.float32)
    x_n = jax.random.normal(k_x2, (B2, D2), dtype=jnp.float32)
    out_n = jax.block_until_ready(gating_forward(x_n, mu_n))
    assert out_n.shape == (B2, D2)
    assert jnp.allclose(out_n, x_n * mu_n[None, :], atol=1e-6, rtol=1e-6)

    # --- multi-step grid with explicit tiles (pipelining path) ------------
    B3, D3 = 64, 256
    mu3 = 0.01 * jax.random.normal(k_mu3, (D3,), dtype=jnp.float32)
    x3 = jax.random.normal(k_x3, (B3, D3), dtype=jnp.float32)
    out3 = jax.block_until_ready(gating_forward(x3, mu3, block_b=16, block_d=256))
    assert jnp.allclose(out3, x3 * mu3[None, :], atol=1e-6, rtol=1e-6)

    # --- bf16 activations with f32 mu ------------------------------------
    x4 = jax.random.normal(k_x4, (batch, input_dim), dtype=jnp.bfloat16)
    ref4_f32 = x4.astype(jnp.float32) * mu[None, :]
    # Default: torch promotion -> f32 output.
    out4 = jax.block_until_ready(gating_forward(x4, mu))
    assert out4.dtype == jnp.float32
    assert jnp.allclose(out4, ref4_f32, atol=1e-6, rtol=1e-6)
    # Opt-in narrow store: compute in f32, round to bf16 (1.5x less HBM traffic).
    out4n = jax.block_until_ready(gating_forward(x4, mu, out_dtype=jnp.bfloat16))
    assert out4n.dtype == jnp.bfloat16
    assert jnp.allclose(out4n.astype(jnp.float32), ref4_f32, atol=2e-2, rtol=2e-2)

    # Exercise the regularizer path too (pure reduction, no kernel needed).
    _ = jax.block_until_ready(gating_regularizer(mu))

    print("KERNEL_OK")
</pallas_src>

<mosaic_0001>
module attributes {stable_mosaic.version = 11 : i64} {
  func.func @_gating_kernel(%arg0: i32, %arg1: i32, %arg2: memref<8x128xf32, #tpu.memory_space<vmem>>, %arg3: memref<1x128xf32, #tpu.memory_space<vmem>>, %arg4: memref<8x128xf32, #tpu.memory_space<vmem>>) attributes {dimension_semantics = [#tpu.dimension_semantics<parallel>, #tpu.dimension_semantics<parallel>], iteration_bounds = array<i64: 1, 1>, scalar_prefetch = 0 : i64, scratch_operands = 0 : i64, tpu.core_type = #tpu.core_type<tc>, window_params = [{transform_indices = @transform_0, window_bounds = array<i64: 8, 128>}, {transform_indices = @transform_1, window_bounds = array<i64: 1, 128>}, {transform_indices = @transform_2, window_bounds = array<i64: 8, 128>}]} {
    %c0 = arith.constant 0 : index
    %c0_0 = arith.constant 0 : index
    %0 = vector.load %arg2[%c0, %c0_0] : memref<8x128xf32, #tpu.memory_space<vmem>>, vector<8x128xf32>
    %c0_1 = arith.constant 0 : index
    %c0_2 = arith.constant 0 : index
    %1 = vector.load %arg3[%c0_1, %c0_2] : memref<1x128xf32, #tpu.memory_space<vmem>>, vector<1x128xf32>
    %2 = vector.broadcast %1 : vector<1x128xf32> to vector<8x128xf32>
    %3 = arith.mulf %0, %2 : vector<8x128xf32>
    %c0_3 = arith.constant 0 : index
    %c0_4 = arith.constant 0 : index
    %4 = vector.load %arg4[%c0_3, %c0_4] : memref<8x128xf32, #tpu.memory_space<vmem>>, vector<8x128xf32>
    tpu.vector_store %arg4[%c0_3, %c0_4], %3 {strides = array<i32>} : memref<8x128xf32, #tpu.memory_space<vmem>>, vector<8x128xf32>,
    return
  }
  func.func @transform_0(%arg0: i32, %arg1: i32) -> (i32, i32) {
    %c0_i32 = arith.constant 0 : i32
    return %arg1, %arg0 : i32, i32
  }
  func.func @transform_1(%arg0: i32, %arg1: i32) -> (i32, i32) {
    %c0_i32 = arith.constant 0 : i32
    %c0_i32_0 = arith.constant 0 : i32
    return %c0_i32, %arg0 : i32, i32
  }
  func.func @transform_2(%arg0: i32, %arg1: i32) -> (i32, i32) {
    %c0_i32 = arith.constant 0 : i32
    return %arg1, %arg0 : i32, i32
  }
}

</mosaic_0001>

<llo_original>
// kernel: tpu_custom_call.1
$region0: #{tpu_custom_call.1}
  #allocation0 [shape = 'u32[]', space=smem, size = 0x4, offset = 0x4, fixed_abs, tag = 'smem constant byte address 0x4 - core index']
  #allocation1 [shape = 'u32[144,128]{1,0:T(1,128)}', space=vmem, size = 0x12000, scoped, tag = 'internal scratch']
  %s0 = inlined_call_operand.hbm [shape: f32[8,128], index: 0, kind: input, shape index: {}]
  %s1 = inlined_call_operand.vmem [shape: f32[1,128], index: 1, kind: input, shape index: {}]
  %s2 = inlined_call_operand.hbm [shape: f32[8,128], index: 2, kind: output, shape index: {}]
  %s3 = sld [smem:[#allocation0]]
  $region22: #{tpu_custom_call.1} parent=0
    _
  %s5 = ssub.s32 1, %s3
  %s6 = scalar_select 0, %s5, %s3
  $region1: #{tpu_custom_call.1} parent=0
    #allocation2 [shape = 'u8[4096]{0}', space=vmem, size = 0x1000, scoped, tag = 'input window, operand 0, single buffered']
    #allocation3 [shape = 's32[1]{0}', space=sflag, size = 0x4, scoped, tag = 'scoped memory for tpu_custom_call.1']
    #allocation4 [shape = 's32[1]{0}', space=sflag, size = 0x4, scoped, tag = 'scoped memory for tpu_custom_call.1']
    #allocation5 [shape = 'u8[4096]{0}', space=vmem, size = 0x1000, scoped, tag = 'output window, operand 0, single buffered']
    %7 = vsyncpa [#allocation3], 0
    %8 = vsyncpa [#allocation4], 0
    // Predicated region
    $region2: #{tpu_custom_call.1} parent=1 // pred_check
      _
    $region3: #{tpu_custom_call.1} parent=1 // pred_check_branch
      %10 = sbr.rel (0) target = $region5
    $region4: #{tpu_custom_call.1} parent=1 // pred_region
      %s12 = ssub.s32 128, 128
      %13 = vsyncadd [#allocation3], %s12
      %s15 = sshll.u32 [#allocation2], 4
      %s16 = int_to_ptr.vmem [resolvable:$true] %s15
      %18 = dma.hbm_to_vmem [thread:$0]  %s0, 128, %s16, [#allocation3]
    $region5: #{tpu_custom_call.1} parent=1 // pred_fallthru
      _
    // Predicated region
    $region6: #{tpu_custom_call.1} parent=1 // pred_check
      _
    $region7: #{tpu_custom_call.1} parent=1 // pred_check_branch
      %20 = sbr.rel (0) target = $region9
    $region8: #{tpu_custom_call.1} parent=1 // pred_region
      _
    $region9: #{tpu_custom_call.1} parent=1 // pred_fallthru
      _
    // Predicated region
    $region10: #{tpu_custom_call.1} parent=1 // pred_check
      _
    $region11: #{tpu_custom_call.1} parent=1 // pred_check_branch
      %22 = sbr.rel (0) target = $region13
    $region12: #{tpu_custom_call.1} parent=1 // pred_region
      %23 = dma.done [#allocation3], 128
    $region13: #{tpu_custom_call.1} parent=1 // pred_fallthru
      _
    %v24 = vld [vmem:[#allocation2] sm:$0xff]
    %v25 = vld [vmem:[%s1] sm:$0x1]
    %v27 = vlaneseq
    %v28 = vshrl.u32 %v27, 7
    %v29 = vsub.s32 0, %v28
    %v30 = vrot.slane %v25, %v29
    %v32 = vmul.f32 %v24, %v30
    %33 = vst [vmem:[#allocation5] sm:$0xff] %v32
    // Predicated region
    $region14: #{tpu_custom_call.1} parent=1 // pred_check
      _
    $region15: #{tpu_custom_call.1} parent=1 // pred_check_branch
      %35 = sbr.rel (0) target = $region17
    $region16: #{tpu_custom_call.1} parent=1 // pred_region
      %s37 = ssub.s32 128, 128
      %38 = vsyncadd [#allocation4], %s37
      %s40 = sshll.u32 [#allocation5], 4
      %s41 = int_to_ptr.vmem [resolvable:$true] %s40
      %43 = dma.vmem_to_hbm [thread:$0]  %s41, 128, %s2, [#allocation4]
    $region17: #{tpu_custom_call.1} parent=1 // pred_fallthru
      _
    // Predicated region
    $region18: #{tpu_custom_call.1} parent=1 // pred_check
      _
    $region19: #{tpu_custom_call.1} parent=1 // pred_check_branch
      %45 = sbr.rel (0) target = $region21
    $region20: #{tpu_custom_call.1} parent=1 // pred_region
      %46 = dma.done [#allocation4], 128
    $region21: #{tpu_custom_call.1} parent=1 // pred_fallthru
      _
    %47 = vsyncpa [#allocation3], 1
    %48 = vsyncpa [#allocation4], 1

</llo_original>
